<compile_context>
chip_gen: v7x
topology: tpu7x:2x2x1
jax: 0.10.0
libtpu: 0.0.40
codegen_flags: <defaults>
</compile_context>

<pallas_src>
import functools
import math

import jax
import jax.numpy as jnp
from jax.experimental import pallas as pl
from jax.experimental.pallas import tpu as pltpu


_BLOCK_BUDGET_BYTES = 3 * 1024 * 1024      # per streamed block (~85%+ of HBM roofline)
_VMEM_LIMIT_BYTES = 32 * 1024 * 1024       # safe on every generation
_FUSE_ALL_BYTES = 12 * 1024 * 1024         # Tier 1 gate: fmap + 2*x_aux resident
_FUSE_FILM_BYTES = 12 * 1024 * 1024        # Tier 2 gate: 2*x_aux resident


def _largest_tile(total, align, max_tile):
    """Largest t <= max_tile with t % align == 0 and total % t == 0; None if none."""
    best = None
    t = align
    limit = min(total, max_tile)
    while t <= limit:
        if total % t == 0:
            best = t
        t += align
    return best


# ---------------------------------------------------------------------------
# Streaming reduction kernels (revisited output block = f32 accumulator)
# ---------------------------------------------------------------------------

def _spatial_mean_kernel(x_ref, o_ref, *, inv):
    # x_ref: (B, c_tile, hw_tile); o_ref: (B, c_tile) lane-dense accumulator.
    k = pl.program_id(1)

    @pl.when(k == 0)
    def _():
        o_ref[...] = jnp.zeros_like(o_ref)

    o_ref[...] += jnp.sum(x_ref[...].astype(jnp.float32), axis=-1)

    @pl.when(k == pl.num_programs(1) - 1)
    def _():
        o_ref[...] *= inv


def _seq_mean_kernel(x_ref, o_ref, *, inv):
    # x_ref: (B, t_tile, c_tile); o_ref: (B, c_tile) lane-dense accumulator.
    k = pl.program_id(1)

    @pl.when(k == 0)
    def _():
        o_ref[...] = jnp.zeros_like(o_ref)

    o_ref[...] += jnp.sum(x_ref[...].astype(jnp.float32), axis=1)

    @pl.when(k == pl.num_programs(1) - 1)
    def _():
        o_ref[...] *= inv


# ---------------------------------------------------------------------------
# Streaming FiLM kernels
# ---------------------------------------------------------------------------

def _film3_kernel(x_ref, s_ref, b_ref, o_ref):
    # x/o: (B, rep, w) streamed, lane-dense; s/b: (B, 1, w) VMEM-resident.
    o_ref[...] = (x_ref[...] * s_ref[...] + b_ref[...]).astype(o_ref.dtype)


def _film_seq_kernel(x_ref, s_ref, b_ref, o_ref):
    # x/o: (B, t_tile, C) streamed; s/b: (B, C) VMEM-resident.
    o_ref[...] = (x_ref[...] * s_ref[...][:, None, :]
                  + b_ref[...][:, None, :]).astype(o_ref.dtype)


# ---------------------------------------------------------------------------
# Fused kernel: (optional spatial mean) + seq mean + tiny MLP + FiLM, all resident
# ---------------------------------------------------------------------------

def _fused_kernel(x_ref, a_ref, txt_ref, w1t_ref, w1s_ref, w1e_ref,
                  w2s_ref, w2b_ref, o_ref, *, squeeze_from_fmap, inv_hw, inv_t):
    x = x_ref[...]                                            # (B, T, C)
    if squeeze_from_fmap:
        squeeze = jnp.sum(a_ref[...].astype(jnp.float32), axis=-1) * inv_hw   # (B, C)
    else:
        squeeze = a_ref[...].astype(jnp.float32)              # (B, C)
    ehr = jnp.sum(x.astype(jnp.float32), axis=1) * inv_t      # (B, C)

    def dot32(a, b):
        return jnp.dot(a, b, preferred_element_type=jnp.float32)

    # cat @ w1 decomposed so no in-kernel concatenation over unaligned lanes is needed.
    h = (dot32(txt_ref[...].astype(jnp.float32), w1t_ref[...])
         + dot32(squeeze, w1s_ref[...])
         + dot32(ehr, w1e_ref[...]))
    h = jnp.maximum(h, 0.0)                                   # aux_base + ReLU
    v_scale = dot32(h, w2s_ref[...])                          # (B, C)
    v_shift = dot32(h, w2b_ref[...])                          # (B, C)
    # activation='linear' -> no scale activation (module default).
    o_ref[...] = (x * v_scale[:, None, :] + v_shift[:, None, :]).astype(o_ref.dtype)


# ---------------------------------------------------------------------------
# Wrappers
# ---------------------------------------------------------------------------

def _spatial_mean(fmap3):
    """(B, C, HW) -> (B, C) f32 mean over the spatial axis (streamed, lane-dense out)."""
    B, C, HW = fmap3.shape
    c_cap = C // 2 if C >= 256 else C            # keep >=2 parallel blocks when feasible
    c_tile = _largest_tile(C, 128, min(256, c_cap)) or C
    hw_cap = max(128, _BLOCK_BUDGET_BYTES // max(1, B * c_tile * 4))
    hw_tile = _largest_tile(HW, 128, hw_cap) or HW
    grid = (C // c_tile, HW // hw_tile)
    return pl.pallas_call(
        functools.partial(_spatial_mean_kernel, inv=1.0 / HW),
        out_shape=jax.ShapeDtypeStruct((B, C), jnp.float32),
        grid=grid,
        in_specs=[pl.BlockSpec((B, c_tile, hw_tile), lambda ci, k: (0, ci, k))],
        out_specs=pl.BlockSpec((B, c_tile), lambda ci, k: (0, ci)),
        compiler_params=pltpu.CompilerParams(
            dimension_semantics=("parallel", "arbitrary"),
            vmem_limit_bytes=_VMEM_LIMIT_BYTES),
    )(fmap3)


def _seq_mean(x_aux):
    """(B, T, C) -> (B, C) f32 mean over T (C parallel, T reduction last)."""
    B, T, C = x_aux.shape
    c_cap = C // 2 if C >= 256 else C
    c_tile = _largest_tile(C, 128, min(256, c_cap)) or C
    t_cap = max(8, _BLOCK_BUDGET_BYTES // max(1, B * c_tile * 4))
    t_tile = _largest_tile(T, 8, t_cap) or T
    grid = (C // c_tile, T // t_tile)
    return pl.pallas_call(
        functools.partial(_seq_mean_kernel, inv=1.0 / T),
        out_shape=jax.ShapeDtypeStruct((B, C), jnp.float32),
        grid=grid,
        in_specs=[pl.BlockSpec((B, t_tile, c_tile), lambda ci, k: (0, k, ci))],
        out_specs=pl.BlockSpec((B, c_tile), lambda ci, k: (0, ci)),
        compiler_params=pltpu.CompilerParams(
            dimension_semantics=("parallel", "arbitrary"),
            vmem_limit_bytes=_VMEM_LIMIT_BYTES),
    )(x_aux)


def _film(x_aux, v_scale, v_shift):
    """Streamed FiLM: v_scale[:,None,:] * x_aux + v_shift[:,None,:]."""
    B, T, C = x_aux.shape
    TC = T * C
    out_dtype = x_aux.dtype

    # Path A: lane-dense (B, TC//w, w) view with w = lcm(C, 128).  Streamed x/out
    # blocks are budget-sized; resident scale/shift stay a single (B, 1, w) row.
    w = math.lcm(C, 128)
    if TC % w == 0:
        M = TC // w
        rep_cap = max(8, _BLOCK_BUDGET_BYTES // max(1, B * w * 4))
        rep = _largest_tile(M, 8, rep_cap)
        if rep is None and B * M * w * 4 <= _BLOCK_BUDGET_BYTES:
            rep = M
        if rep is not None:
            x3 = x_aux.reshape(B, M, w)
            s3 = jnp.tile(v_scale.astype(jnp.float32), (1, w // C)).reshape(B, 1, w)
            b3 = jnp.tile(v_shift.astype(jnp.float32), (1, w // C)).reshape(B, 1, w)
            out = pl.pallas_call(
                _film3_kernel,
                out_shape=jax.ShapeDtypeStruct((B, M, w), out_dtype),
                grid=(M // rep,),
                in_specs=[
                    pl.BlockSpec((B, rep, w), lambda j: (0, j, 0)),
                    pl.BlockSpec((B, 1, w), lambda j: (0, 0, 0)),
                    pl.BlockSpec((B, 1, w), lambda j: (0, 0, 0)),
                ],
                out_specs=pl.BlockSpec((B, rep, w), lambda j: (0, j, 0)),
                compiler_params=pltpu.CompilerParams(
                    dimension_semantics=("parallel",),
                    vmem_limit_bytes=_VMEM_LIMIT_BYTES),
            )(x3, s3, b3)
            return out.reshape(B, T, C)

    # Path B fallback: C on the lane axis, stream over T.
    t_cap = max(8, _BLOCK_BUDGET_BYTES // max(1, B * C * 4))
    t_tile = _largest_tile(T, 8, t_cap) or T
    return pl.pallas_call(
        _film_seq_kernel,
        out_shape=jax.ShapeDtypeStruct((B, T, C), out_dtype),
        grid=(T // t_tile,),
        in_specs=[
            pl.BlockSpec((B, t_tile, C), lambda j: (0, j, 0)),
            pl.BlockSpec((B, C), lambda j: (0, 0)),
            pl.BlockSpec((B, C), lambda j: (0, 0)),
        ],
        out_specs=pl.BlockSpec((B, t_tile, C), lambda j: (0, j, 0)),
        compiler_params=pltpu.CompilerParams(
            dimension_semantics=("parallel",),
            vmem_limit_bytes=_VMEM_LIMIT_BYTES),
    )(x_aux, v_scale, v_shift)


def _fused_daft(x_aux, squeeze_or_fmap3, txt, w1t, w1s, w1e, w2s, w2b,
                *, squeeze_from_fmap, inv_hw, inv_t):
    """Single pallas_call with all operands VMEM-resident (no grid)."""
    B, T, C = x_aux.shape
    return pl.pallas_call(
        functools.partial(_fused_kernel, squeeze_from_fmap=squeeze_from_fmap,
                          inv_hw=inv_hw, inv_t=inv_t),
        out_shape=jax.ShapeDtypeStruct((B, T, C), x_aux.dtype),
        compiler_params=pltpu.CompilerParams(vmem_limit_bytes=_VMEM_LIMIT_BYTES),
    )(x_aux, squeeze_or_fmap3, txt, w1t, w1s, w1e, w2s, w2b)


@jax.jit
def daft_block(txt_embedding, feature_map, x_aux, w1, w2):
    """DAFTBlock forward (scale=True, shift=True, activation='linear').

    txt_embedding: (B, ndim_non_img)
    feature_map:   (B, C, H, W)
    x_aux:         (B, T, C)
    w1: (ndim_non_img + 2*C, bottleneck)   (aux_base weight, transposed vs torch)
    w2: (bottleneck, 2*C)                  (aux_out  weight, transposed vs torch)
    """
    B, C, H, W = feature_map.shape
    Bx, T, Cx = x_aux.shape
    assert Bx == B and Cx == C
    Nd = txt_embedding.shape[1]
    HW = H * W

    fmap3 = feature_map.reshape(B, C, HW)
    x_bytes = x_aux.size * x_aux.dtype.itemsize
    fmap_bytes = feature_map.size * feature_map.dtype.itemsize

    # Split the tiny bias-free MLP weights once (trivial XLA slices).
    w1t, w1s, w1e = w1[:Nd], w1[Nd:Nd + C], w1[Nd + C:]
    w2s, w2b = w2[:, :C], w2[:, C:]

    # --- Tier 1: small problem -> single fully-fused kernel, everything resident. ----
    if fmap_bytes + 2 * x_bytes <= _FUSE_ALL_BYTES:
        return _fused_daft(x_aux, fmap3, txt_embedding, w1t, w1s, w1e, w2s, w2b,
                           squeeze_from_fmap=True, inv_hw=1.0 / HW, inv_t=1.0 / T)

    # --- Tier 2: streamed spatial mean + fused (seq mean -> MLP -> FiLM). ------------
    squeeze = _spatial_mean(fmap3)                              # (B, C) f32
    if 2 * x_bytes <= _FUSE_FILM_BYTES:
        return _fused_daft(x_aux, squeeze, txt_embedding, w1t, w1s, w1e, w2s, w2b,
                           squeeze_from_fmap=False, inv_hw=1.0 / HW, inv_t=1.0 / T)

    # --- Tier 3: fully streamed; tiny MLP stays in XLA off the kernel path. ----------
    ehr_avg = _seq_mean(x_aux)                                  # (B, C) f32
    cat = jnp.concatenate(
        [txt_embedding.astype(jnp.float32), squeeze, ehr_avg], axis=1)
    h = jnp.maximum(cat @ w1, 0.0)                              # aux_base + ReLU
    attention = h @ w2                                          # aux_out
    v_scale, v_shift = attention[:, :C], attention[:, C:]
    # activation='linear' -> no scale activation (module default).
    # TODO(synk): sigmoid/tanh scale_activation variants are not implemented here.
    return _film(x_aux, v_scale, v_shift)


def daft_reference(txt_embedding, feature_map, x_aux, w1, w2):
    """Pure-JAX reference mirroring the torch forward."""
    B, C, H, W = feature_map.shape
    ehr_avg = jnp.mean(x_aux, axis=1)                           # (B, C)
    squeeze = jnp.mean(feature_map, axis=(2, 3))                # (B, C)
    cat = jnp.concatenate([txt_embedding, squeeze, ehr_avg], axis=1)
    h = jnp.maximum(cat @ w1, 0.0)
    attention = h @ w2                                          # (B, 2C)
    return attention[:, None, :C] * x_aux + attention[:, None, C:]


if __name__ == "__main__":
    def run_case(key, B, C, H, W, T, Nd=15, BN=7):
        k1, k2, k3, k4, k5 = jax.random.split(key, 5)
        txt = jax.random.normal(k1, (B, Nd), dtype=jnp.float32)
        fmap = jax.random.normal(k2, (B, C, H, W), dtype=jnp.float32)
        x_aux = jax.random.normal(k3, (B, T, C), dtype=jnp.float32)
        w1 = jax.random.normal(k4, (Nd + 2 * C, BN), dtype=jnp.float32) * 0.1
        w2 = jax.random.normal(k5, (BN, 2 * C), dtype=jnp.float32) * 0.1

        out = jax.block_until_ready(daft_block(txt, fmap, x_aux, w1, w2))
        ref = daft_reference(txt, fmap, x_aux, w1, w2)
        assert out.shape == x_aux.shape
        err = float(jnp.max(jnp.abs(out - ref)))
        assert jnp.allclose(out, ref, atol=1e-3, rtol=1e-3), err

    key = jax.random.PRNGKey(0)
    ka, kb, kc = jax.random.split(key, 3)

    # Tier 1: module-default-ish shapes -> single fully-fused kernel.
    run_case(ka, B=2, C=4, H=16, W=16, T=8)
    # Tier 2: large feature map -> streamed spatial mean + fused seq-mean/MLP/FiLM.
    run_case(kb, B=4, C=128, H=96, W=96, T=64)
    # Tier 3: large x_aux -> fully streamed (parallel C reductions, lane-dense FiLM A).
    run_case(kc, B=4, C=256, H=32, W=32, T=4096)

    print("KERNEL_OK")
</pallas_src>

<mosaic_0001>
module attributes {stable_mosaic.version = 11 : i64} {
  func.func @_fused_kernel(%arg0: memref<2x8x4xf32, #tpu.memory_space<vmem>>, %arg1: memref<2x4x256xf32, #tpu.memory_space<vmem>>, %arg2: memref<2x15xf32, #tpu.memory_space<vmem>>, %arg3: memref<15x7xf32, #tpu.memory_space<vmem>>, %arg4: memref<4x7xf32, #tpu.memory_space<vmem>>, %arg5: memref<4x7xf32, #tpu.memory_space<vmem>>, %arg6: memref<7x4xf32, #tpu.memory_space<vmem>>, %arg7: memref<7x4xf32, #tpu.memory_space<vmem>>, %arg8: memref<2x8x4xf32, #tpu.memory_space<vmem>>) attributes {dimension_semantics = [], scalar_prefetch = 0 : i64, scratch_operands = 0 : i64, tpu.core_type = #tpu.core_type<tc>} {
    %c0 = arith.constant 0 : index
    %c0_0 = arith.constant 0 : index
    %c0_1 = arith.constant 0 : index
    %0 = vector.load %arg0[%c0, %c0_0, %c0_1] : memref<2x8x4xf32, #tpu.memory_space<vmem>>, vector<2x8x4xf32>
    %c0_2 = arith.constant 0 : index
    %c0_3 = arith.constant 0 : index
    %c0_4 = arith.constant 0 : index
    %1 = vector.load %arg1[%c0_2, %c0_3, %c0_4] : memref<2x4x256xf32, #tpu.memory_space<vmem>>, vector<2x4x256xf32>
    %cst = arith.constant dense<0.000000e+00> : vector<2x4xf32>
    %2 = vector.multi_reduction <add>, %1, %cst [2] : vector<2x4x256xf32> to vector<2x4xf32>
    %cst_5 = arith.constant 3.906250e-03 : f32
    %3 = vector.broadcast %cst_5 : f32 to vector<2x4xf32>
    %4 = arith.mulf %2, %3 : vector<2x4xf32>
    %cst_6 = arith.constant dense<0.000000e+00> : vector<2x4xf32>
    %5 = vector.multi_reduction <add>, %0, %cst_6 [1] : vector<2x8x4xf32> to vector<2x4xf32>
    %cst_7 = arith.constant 1.250000e-01 : f32
    %6 = vector.broadcast %cst_7 : f32 to vector<2x4xf32>
    %7 = arith.mulf %5, %6 : vector<2x4xf32>
    %c0_8 = arith.constant 0 : index
    %c0_9 = arith.constant 0 : index
    %8 = vector.load %arg2[%c0_8, %c0_9] : memref<2x15xf32, #tpu.memory_space<vmem>>, vector<2x15xf32>
    %c0_10 = arith.constant 0 : index
    %c0_11 = arith.constant 0 : index
    %9 = vector.load %arg3[%c0_10, %c0_11] : memref<15x7xf32, #tpu.memory_space<vmem>>, vector<15x7xf32>
    %cst_12 = arith.constant dense<0.000000e+00> : vector<2x7xf32>
    %10 = tpu.matmul %8, %9, %cst_12 {dimension_numbers = #tpu.dot_dimension_numbers<[1], [0], [0], [1], [0, 0, 1, 1], [], []>} : vector<2x15xf32>, vector<15x7xf32>, vector<2x7xf32> -> vector<2x7xf32>
    %c0_13 = arith.constant 0 : index
    %c0_14 = arith.constant 0 : index
    %11 = vector.load %arg4[%c0_13, %c0_14] : memref<4x7xf32, #tpu.memory_space<vmem>>, vector<4x7xf32>
    %cst_15 = arith.constant dense<0.000000e+00> : vector<2x7xf32>
    %12 = tpu.matmul %4, %11, %cst_15 {dimension_numbers = #tpu.dot_dimension_numbers<[1], [0], [0], [1], [0, 0, 1, 1], [], []>} : vector<2x4xf32>, vector<4x7xf32>, vector<2x7xf32> -> vector<2x7xf32>
    %13 = arith.addf %10, %12 : vector<2x7xf32>
    %c0_16 = arith.constant 0 : index
    %c0_17 = arith.constant 0 : index
    %14 = vector.load %arg5[%c0_16, %c0_17] : memref<4x7xf32, #tpu.memory_space<vmem>>, vector<4x7xf32>
    %cst_18 = arith.constant dense<0.000000e+00> : vector<2x7xf32>
    %15 = tpu.matmul %7, %14, %cst_18 {dimension_numbers = #tpu.dot_dimension_numbers<[1], [0], [0], [1], [0, 0, 1, 1], [], []>} : vector<2x4xf32>, vector<4x7xf32>, vector<2x7xf32> -> vector<2x7xf32>
    %16 = arith.addf %13, %15 : vector<2x7xf32>
    %cst_19 = arith.constant 0.000000e+00 : f32
    %17 = vector.broadcast %cst_19 : f32 to vector<2x7xf32>
    %18 = arith.maximumf %16, %17 : vector<2x7xf32>
    %c0_20 = arith.constant 0 : index
    %c0_21 = arith.constant 0 : index
    %19 = vector.load %arg6[%c0_20, %c0_21] : memref<7x4xf32, #tpu.memory_space<vmem>>, vector<7x4xf32>
    %cst_22 = arith.constant dense<0.000000e+00> : vector<2x4xf32>
    %20 = tpu.matmul %18, %19, %cst_22 {dimension_numbers = #tpu.dot_dimension_numbers<[1], [0], [0], [1], [0, 0, 1, 1], [], []>} : vector<2x7xf32>, vector<7x4xf32>, vector<2x4xf32> -> vector<2x4xf32>
    %c0_23 = arith.constant 0 : index
    %c0_24 = arith.constant 0 : index
    %21 = vector.load %arg7[%c0_23, %c0_24] : memref<7x4xf32, #tpu.memory_space<vmem>>, vector<7x4xf32>
    %cst_25 = arith.constant dense<0.000000e+00> : vector<2x4xf32>
    %22 = tpu.matmul %18, %21, %cst_25 {dimension_numbers = #tpu.dot_dimension_numbers<[1], [0], [0], [1], [0, 0, 1, 1], [], []>} : vector<2x7xf32>, vector<7x4xf32>, vector<2x4xf32> -> vector<2x4xf32>
    %23 = vector.shape_cast %20 : vector<2x4xf32> to vector<2x1x4xf32>
    %24 = vector.broadcast %23 : vector<2x1x4xf32> to vector<2x8x4xf32>
    %25 = arith.mulf %0, %24 : vector<2x8x4xf32>
    %26 = vector.shape_cast %22 : vector<2x4xf32> to vector<2x1x4xf32>
    %27 = vector.broadcast %26 : vector<2x1x4xf32> to vector<2x8x4xf32>
    %28 = arith.addf %25, %27 : vector<2x8x4xf32>
    %c0_26 = arith.constant 0 : index
    %c0_27 = arith.constant 0 : index
    %c0_28 = arith.constant 0 : index
    %29 = vector.load %arg8[%c0_26, %c0_27, %c0_28] : memref<2x8x4xf32, #tpu.memory_space<vmem>>, vector<2x8x4xf32>
    tpu.vector_store %arg8[%c0_26, %c0_27, %c0_28], %28 {strides = array<i32>} : memref<2x8x4xf32, #tpu.memory_space<vmem>>, vector<2x8x4xf32>,
    return
  }
}

</mosaic_0001>

<llo_original>
// kernel: daft_block.1
$region0: #{daft_block.1}
  #allocation0 [shape = 'u32[]', space=smem, size = 0x4, offset = 0x4, fixed_abs, tag = 'smem constant byte address 0x4 - core index']
  #allocation1 [shape = 'u32[144,128]{1,0:T(1,128)}', space=vmem, size = 0x12000, scoped, tag = 'internal scratch']
  %s0 = inlined_call_operand.vmem [shape: f32[2,8,4], index: 0, kind: input, shape index: {}]
  %s1 = inlined_call_operand.vmem [shape: f32[2,4,256], index: 1, kind: input, shape index: {}]
  %s2 = inlined_call_operand.vmem [shape: f32[2,15], index: 2, kind: input, shape index: {}]
  %s3 = inlined_call_operand.vmem [shape: f32[15,7], index: 3, kind: input, shape index: {}]
  %s4 = inlined_call_operand.vmem [shape: f32[4,7], index: 4, kind: input, shape index: {}]
  %s5 = inlined_call_operand.vmem [shape: f32[4,7], index: 5, kind: input, shape index: {}]
  %s6 = inlined_call_operand.vmem [shape: f32[7,4], index: 6, kind: input, shape index: {}]
  %s7 = inlined_call_operand.vmem [shape: f32[7,4], index: 7, kind: input, shape index: {}]
  %s8 = inlined_call_operand.vmem [shape: f32[2,8,4], index: 8, kind: output, shape index: {}]
  %s9 = sld [smem:[#allocation0]]
  $region42: #{daft_block.1} parent=0
    _
  %s11 = ssub.s32 1, %s9
  %s12 = scalar_select 0, %s11, %s9
  // Predicated region
  $region2: #{daft_block.1} parent=0 // pred_check
    _
  $region3: #{daft_block.1} parent=0 // pred_check_branch
    %14 = sbr.rel (0) target = $region5
  $region4: #{daft_block.1} parent=0 // pred_region
    _
  $region5: #{daft_block.1} parent=0 // pred_fallthru
    _
  // Predicated region
  $region6: #{daft_block.1} parent=0 // pred_check
    _
  $region7: #{daft_block.1} parent=0 // pred_check_branch
    %16 = sbr.rel (0) target = $region9
  $region8: #{daft_block.1} parent=0 // pred_region
    _
  $region9: #{daft_block.1} parent=0 // pred_fallthru
    _
  // Predicated region
  $region10: #{daft_block.1} parent=0 // pred_check
    _
  $region11: #{daft_block.1} parent=0 // pred_check_branch
    %18 = sbr.rel (0) target = $region13
  $region12: #{daft_block.1} parent=0 // pred_region
    _
  $region13: #{daft_block.1} parent=0 // pred_fallthru
    _
  // Predicated region
  $region14: #{daft_block.1} parent=0 // pred_check
    _
  $region15: #{daft_block.1} parent=0 // pred_check_branch
    %20 = sbr.rel (0) target = $region17
  $region16: #{daft_block.1} parent=0 // pred_region
    _
  $region17: #{daft_block.1} parent=0 // pred_fallthru
    _
  // Predicated region
  $region18: #{daft_block.1} parent=0 // pred_check
    _
  $region19: #{daft_block.1} parent=0 // pred_check_branch
    %22 = sbr.rel (0) target = $region21
  $region20: #{daft_block.1} parent=0 // pred_region
    _
  $region21: #{daft_block.1} parent=0 // pred_fallthru
    _
  // Predicated region
  $region22: #{daft_block.1} parent=0 // pred_check
    _
  $region23: #{daft_block.1} parent=0 // pred_check_branch
    %24 = sbr.rel (0) target = $region25
  $region24: #{daft_block.1} parent=0 // pred_region
    _
  $region25: #{daft_block.1} parent=0 // pred_fallthru
    _
  // Predicated region
  $region26: #{daft_block.1} parent=0 // pred_check
    _
  $region27: #{daft_block.1} parent=0 // pred_check_branch
    %26 = sbr.rel (0) target = $region29
  $region28: #{daft_block.1} parent=0 // pred_region
    _
  $region29: #{daft_block.1} parent=0 // pred_fallthru
    _
  // Predicated region
  $region30: #{daft_block.1} parent=0 // pred_check
    _
  $region31: #{daft_block.1} parent=0 // pred_check_branch
    %28 = sbr.rel (0) target = $region33
  $region32: #{daft_block.1} parent=0 // pred_region
    _
  $region33: #{daft_block.1} parent=0 // pred_fallthru
    _
  %v29 = vld [vmem:[%s0] sm:$0xff]
  %v30 = vld [vmem:[%s0 + $0x8] sm:$0xff]
  %v31 = vld [vmem:[%s1] sm:$0xff]
  %v32 = vld [vmem:[%s1 + $0x8] sm:$0xff]
  %v35 = vcombine.high %v31, %v31
  %v36 = vcombine.high %v32, %v32
  %vm39 = vcmask 1043456
  %v40 = vsel %vm39, %v31, 0.0
  %v41 = vsel %vm39, %v35, 0.0
  %v42 = vadd.f32 %v40, %v41
  %43 = vadd.xlane.f32.xlu0 %v42
  %v44 = vpop.xlane.xlu0 %43
  %v45 = vsel %vm39, %v32, 0.0
  %v46 = vsel %vm39, %v36, 0.0
  %v47 = vadd.f32 %v45, %v46
  %48 = vadd.xlane.f32.xlu0 %v47
  %v49 = vpop.xlane.xlu0 %48
  %v50 = vmul.f32 %v44, 0.00390625
  %v51 = vmul.f32 %v49, 0.00390625
  %vm52 = vcmask 31744
  %v53 = vsel %vm52, %v29, 0.0
  %v54 = vrot.slane %v53, 4
  %v55 = vadd.f32 %v53, %v54
  %v56 = vrot.slane %v55, 2
  %v57 = vadd.f32 %v55, %v56
  %v58 = vrot.slane %v57, 1
  %v59 = vadd.f32 %v57, %v58
  %v60 = vsel %vm52, %v30, 0.0
  %v61 = vrot.slane %v60, 4
  %v62 = vadd.f32 %v60, %v61
  %v63 = vrot.slane %v62, 2
  %v64 = vadd.f32 %v62, %v63
  %v65 = vrot.slane %v64, 1
  %v66 = vadd.f32 %v64, %v65
  %v67 = vmul.f32 %v59, 0.125
  %v68 = vmul.f32 %v66, 0.125
  %v69 = vld [vmem:[%s2] sm:$0x3]
  %v70 = vld [vmem:[%s3] sm:$0xff]
  %v71 = vld [vmem:[%s3 + $0x8] sm:$0x7f]
  %v72 = vld [vmem:[%s4] sm:$0xf]
  %v75 = vlaneseq
  %v76 = vand.u32 %v75, 127
  %v77 = vlaneseq
  %v78 = vshrl.u32 %v77, 7
  %v79 = vsub.s32 %v76, %v78
  %v80 = vrot.slane %v50, %v79
  %v81 = vlaneseq
  %v82 = vshrl.u32 %v81, 7
  %v83 = vsub.s32 %v76, %v82
  %v84 = vrot.slane %v51, %v83
  %vm85 = vcmask 1041409
  %v86 = vsel %vm85, %v84, %v80
  %v87 = vsel %vm52, %v86, 0
  %v90 = vsel %vm39, %v72, 0
  %92 = vmatprep.subr.mxu0 0.0
  %93 = vmatpush1.msra.mxu0 %v90
  %94 = vmatprep.subr.mxu0 0.0
  %95 = vmatpush1.msra.mxu0 0.0
  %96 = vmatprep.subr.mxu0 0.0
  %97 = vmatpush1.msra.mxu0 0.0
  %98 = vmatprep.subr.mxu0 0.0
  %99 = vmatpush1.msra.mxu0 0.0
  %100 = vmatprep.subr.mxu0 0.0
  %101 = vmatpush1.msra.mxu0 0.0
  %102 = vmatprep.subr.mxu0 0.0
  %103 = vmatpush1.msra.mxu0 0.0
  %104 = vmatprep.subr.mxu0 0.0
  %105 = vmatpush1.msra.mxu0 0.0
  %106 = vmatprep.subr.mxu0 0.0
  %107 = vmatpush1.msra.mxu0 0.0
  %108 = vmatprep.subr.mxu0 0.0
  %109 = vmatpush1.msra.mxu0 0.0
  %110 = vmatprep.subr.mxu0 0.0
  %111 = vmatpush1.msra.mxu0 0.0
  %112 = vmatprep.subr.mxu0 0.0
  %113 = vmatpush1.msra.mxu0 0.0
  %114 = vmatprep.subr.mxu0 0.0
  %115 = vmatpush1.msra.mxu0 0.0
  %116 = vmatprep.subr.mxu0 0.0
  %117 = vmatpush1.msra.mxu0 0.0
  %118 = vmatprep.subr.mxu0 0.0
  %119 = vmatpush1.msra.mxu0 0.0
  %120 = vmatprep.subr.mxu0 0.0
  %121 = vmatpush1.msra.mxu0 0.0
  %122 = vmatprep.subr.mxu0 0.0
  %123 = vmatpush1.msra.mxu0 0.0
  %124 = vmatprep.subr.mxu0 0.0
  %125 = vmatpush1.msra.mxu0 0.0
  %126 = vmatprep.subr.mxu0 0.0
  %127 = vmatpush1.msra.mxu0 0.0
  %128 = vmatprep.subr.mxu0 0.0
  %129 = vmatpush1.msra.mxu0 0.0
  %130 = vmatprep.subr.mxu0 0.0
  %131 = vmatpush1.msra.mxu0 0.0
  %132 = vmatprep.subr.mxu0 0.0
  %133 = vmatpush1.msra.mxu0 0.0
  %134 = vmatprep.subr.mxu0 0.0
  %135 = vmatpush1.msra.mxu0 0.0
  %136 = vmatprep.subr.mxu0 0.0
  %137 = vmatpush1.msra.mxu0 0.0
  %138 = vmatprep.subr.mxu0 0.0
  %139 = vmatpush1.msra.mxu0 0.0
  %140 = vmatprep.subr.mxu0 0.0
  %141 = vmatpush1.msra.mxu0 0.0
  %142 = vmatprep.subr.mxu0 0.0
  %143 = vmatpush1.msra.mxu0 0.0
  %144 = vmatprep.subr.mxu0 0.0
  %145 = vmatpush1.msra.mxu0 0.0
  %146 = vmatprep.subr.mxu0 0.0
  %147 = vmatpush1.msra.mxu0 0.0
  %148 = vmatprep.subr.mxu0 0.0
  %149 = vmatpush1.msra.mxu0 0.0
  %150 = vmatprep.subr.mxu0 0.0
  %151 = vmatpush1.msra.mxu0 0.0
  %152 = vmatprep.subr.mxu0 0.0
  %153 = vmatpush1.msra.mxu0 0.0
  %154 = vmatprep.subr.mxu0 0.0
  %155 = vmatpush1.msra.mxu0 0.0
  %156 = vmatprep.mubr.f32.mxu0 0.0
  %157 = vmatmul.mubr.f32.gmra.mrb[0].mxu0 %v87
  %v158 = vpop.f32.mrb[0].mxu0
  %v159 = vadd.f32 0.0, %v158
  %v160 = vpop.f32.mrb[0].mxu0
  %161 = vdwg.mxu0
  %vm162 = vcmask 121856
  %v164 = vsel %vm162, %v69, 0
  %vm166 = vcmask 1046528
  %v168 = vsel %vm166, %v71, 0
  %170 = vmatprep.subr.mxu0 0.0
  %171 = vmatpush1.msra.mxu0 %v70
  %172 = vmatprep.subr.mxu0 0.0
  %173 = vmatpush1.msra.mxu0 %v168
  %174 = vmatprep.subr.mxu0 0.0
  %175 = vmatpush1.msra.mxu0 0.0
  %176 = vmatprep.subr.mxu0 0.0
  %177 = vmatpush1.msra.mxu0 0.0
  %178 = vmatprep.subr.mxu0 0.0
  %179 = vmatpush1.msra.mxu0 0.0
  %180 = vmatprep.subr.mxu0 0.0
  %181 = vmatpush1.msra.mxu0 0.0
  %182 = vmatprep.subr.mxu0 0.0
  %183 = vmatpush1.msra.mxu0 0.0
  %184 = vmatprep.subr.mxu0 0.0
  %185 = vmatpush1.msra.mxu0 0.0
  %186 = vmatprep.subr.mxu0 0.0
  %187 = vmatpush1.msra.mxu0 0.0
  %188 = vmatprep.subr.mxu0 0.0
  %189 = vmatpush1.msra.mxu0 0.0
  %190 = vmatprep.subr.mxu0 0.0
  %191 = vmatpush1.msra.mxu0 0.0
  %192 = vmatprep.subr.mxu0 0.0
  %193 = vmatpush1.msra.mxu0 0.0
  %194 = vmatprep.subr.mxu0 0.0
  %195 = vmatpush1.msra.mxu0 0.0
  %196 = vmatprep.subr.mxu0 0.0
  %197 = vmatpush1.msra.mxu0 0.0
  %198 = vmatprep.subr.mxu0 0.0
  %199 = vmatpush1.msra.mxu0 0.0
  %200 = vmatprep.subr.mxu0 0.0
  %201 = vmatpush1.msra.mxu0 0.0
  %202 = vmatprep.subr.mxu0 0.0
  %203 = vmatpush1.msra.mxu0 0.0
  %204 = vmatprep.subr.mxu0 0.0
  %205 = vmatpush1.msra.mxu0 0.0
  %206 = vmatprep.subr.mxu0 0.0
  %207 = vmatpush1.msra.mxu0 0.0
  %208 = vmatprep.subr.mxu0 0.0
  %209 = vmatpush1.msra.mxu0 0.0
  %210 = vmatprep.subr.mxu0 0.0
  %211 = vmatpush1.msra.mxu0 0.0
  %212 = vmatprep.subr.mxu0 0.0
  %213 = vmatpush1.msra.mxu0 0.0
  %214 = vmatprep.subr.mxu0 0.0
  %215 = vmatpush1.msra.mxu0 0.0
  %216 = vmatprep.subr.mxu0 0.0
  %217 = vmatpush1.msra.mxu0 0.0
  %218 = vmatprep.subr.mxu0 0.0
  %219 = vmatpush1.msra.mxu0 0.0
  %220 = vmatprep.subr.mxu0 0.0
  %221 = vmatpush1.msra.mxu0 0.0
  %222 = vmatprep.subr.mxu0 0.0
  %223 = vmatpush1.msra.mxu0 0.0
  %224 = vmatprep.subr.mxu0 0.0
  %225 = vmatpush1.msra.mxu0 0.0
  %226 = vmatprep.subr.mxu0 0.0
  %227 = vmatpush1.msra.mxu0 0.0
  %228 = vmatprep.subr.mxu0 0.0
  %229 = vmatpush1.msra.mxu0 0.0
  %230 = vmatprep.subr.mxu0 0.0
  %231 = vmatpush1.msra.mxu0 0.0
  %232 = vmatprep.subr.mxu0 0.0
  %233 = vmatpush1.msra.mxu0 0.0
  %234 = vmatprep.mubr.f32.mxu0 0.0
  %235 = vmatmul.mubr.f32.gmra.mrb[0].mxu0 %v164
  %v236 = vpop.f32.mrb[0].mxu0
  %v237 = vadd.f32 %v159, %v236
  %v238 = vpop.f32.mrb[0].mxu0
  %239 = vdwg.mxu0
  %v240 = vld [vmem:[%s5] sm:$0xf]
  %v243 = vsel %vm85, %v68, %v67
  %v244 = vsel %vm52, %v243, 0
  %v247 = vsel %vm39, %v240, 0
  %249 = vmatprep.subr.mxu0 0.0
  %250 = vmatpush1.msra.mxu0 %v247
  %251 = vmatprep.subr.mxu0 0.0
  %252 = vmatpush1.msra.mxu0 0.0
  %253 = vmatprep.subr.mxu0 0.0
  %254 = vmatpush1.msra.mxu0 0.0
  %255 = vmatprep.subr.mxu0 0.0
  %256 = vmatpush1.msra.mxu0 0.0
  %257 = vmatprep.subr.mxu0 0.0
  %258 = vmatpush1.msra.mxu0 0.0
  %259 = vmatprep.subr.mxu0 0.0
  %260 = vmatpush1.msra.mxu0 0.0
  %261 = vmatprep.subr.mxu0 0.0
  %262 = vmatpush1.msra.mxu0 0.0
  %263 = vmatprep.subr.mxu0 0.0
  %264 = vmatpush1.msra.mxu0 0.0
  %265 = vmatprep.subr.mxu0 0.0
  %266 = vmatpush1.msra.mxu0 0.0
  %267 = vmatprep.subr.mxu0 0.0
  %268 = vmatpush1.msra.mxu0 0.0
  %269 = vmatprep.subr.mxu0 0.0
  %270 = vmatpush1.msra.mxu0 0.0
  %271 = vmatprep.subr.mxu0 0.0
  %272 = vmatpush1.msra.mxu0 0.0
  %273 = vmatprep.subr.mxu0 0.0
  %274 = vmatpush1.msra.mxu0 0.0
  %275 = vmatprep.subr.mxu0 0.0
  %276 = vmatpush1.msra.mxu0 0.0
  %277 = vmatprep.subr.mxu0 0.0
  %278 = vmatpush1.msra.mxu0 0.0
  %279 = vmatprep.subr.mxu0 0.0
  %280 = vmatpush1.msra.mxu0 0.0
  %281 = vmatprep.subr.mxu0 0.0
  %282 = vmatpush1.msra.mxu0 0.0
  %283 = vmatprep.subr.mxu0 0.0
  %284 = vmatpush1.msra.mxu0 0.0
  %285 = vmatprep.subr.mxu0 0.0
  %286 = vmatpush1.msra.mxu0 0.0
  %287 = vmatprep.subr.mxu0 0.0
  %288 = vmatpush1.msra.mxu0 0.0
  %289 = vmatprep.subr.mxu0 0.0
  %290 = vmatpush1.msra.mxu0 0.0
  %291 = vmatprep.subr.mxu0 0.0
  %292 = vmatpush1.msra.mxu0 0.0
  %293 = vmatprep.subr.mxu0 0.0
  %294 = vmatpush1.msra.mxu0 0.0
  %295 = vmatprep.subr.mxu0 0.0
  %296 = vmatpush1.msra.mxu0 0.0
  %297 = vmatprep.subr.mxu0 0.0
  %298 = vmatpush1.msra.mxu0 0.0
  %299 = vmatprep.subr.mxu0 0.0
  %300 = vmatpush1.msra.mxu0 0.0
  %301 = vmatprep.subr.mxu0 0.0
  %302 = vmatpush1.msra.mxu0 0.0
  %303 = vmatprep.subr.mxu0 0.0
  %304 = vmatpush1.msra.mxu0 0.0
  %305 = vmatprep.subr.mxu0 0.0
  %306 = vmatpush1.msra.mxu0 0.0
  %307 = vmatprep.subr.mxu0 0.0
  %308 = vmatpush1.msra.mxu0 0.0
  %309 = vmatprep.subr.mxu0 0.0
  %310 = vmatpush1.msra.mxu0 0.0
  %311 = vmatprep.subr.mxu0 0.0
  %312 = vmatpush1.msra.mxu0 0.0
  %313 = vmatprep.mubr.f32.mxu0 0.0
  %314 = vmatmul.mubr.f32.gmra.mrb[0].mxu0 %v244
  %v315 = vpop.f32.mrb[0].mxu0
  %v316 = vadd.f32 0.0, %v315
  %v317 = vpop.f32.mrb[0].mxu0
  %318 = vdwg.mxu0
  %v319 = vadd.f32 %v237, %v316
  %v320 = vmax.f32 %v319, 0.0
  %v321 = vld [vmem:[%s6] sm:$0x7f]
  %vm322 = vcmask 56320
  %v324 = vsel %vm322, %v320, 0
  %v327 = vsel %vm166, %v321, 0
  %329 = vmatprep.subr.mxu0 0.0
  %330 = vmatpush1.msra.mxu0 %v327
  %331 = vmatprep.subr.mxu0 0.0
  %332 = vmatpush1.msra.mxu0 0.0
  %333 = vmatprep.subr.mxu0 0.0
  %334 = vmatpush1.msra.mxu0 0.0
  %335 = vmatprep.subr.mxu0 0.0
  %336 = vmatpush1.msra.mxu0 0.0
  %337 = vmatprep.subr.mxu0 0.0
  %338 = vmatpush1.msra.mxu0 0.0
  %339 = vmatprep.subr.mxu0 0.0
  %340 = vmatpush1.msra.mxu0 0.0
  %341 = vmatprep.subr.mxu0 0.0
  %342 = vmatpush1.msra.mxu0 0.0
  %343 = vmatprep.subr.mxu0 0.0
  %344 = vmatpush1.msra.mxu0 0.0
  %345 = vmatprep.subr.mxu0 0.0
  %346 = vmatpush1.msra.mxu0 0.0
  %347 = vmatprep.subr.mxu0 0.0
  %348 = vmatpush1.msra.mxu0 0.0
  %349 = vmatprep.subr.mxu0 0.0
  %350 = vmatpush1.msra.mxu0 0.0
  %351 = vmatprep.subr.mxu0 0.0
  %352 = vmatpush1.msra.mxu0 0.0
  %353 = vmatprep.subr.mxu0 0.0
  %354 = vmatpush1.msra.mxu0 0.0
  %355 = vmatprep.subr.mxu0 0.0
  %356 = vmatpush1.msra.mxu0 0.0
  %357 = vmatprep.subr.mxu0 0.0
  %358 = vmatpush1.msra.mxu0 0.0
  %359 = vmatprep.subr.mxu0 0.0
  %360 = vmatpush1.msra.mxu0 0.0
  %361 = vmatprep.subr.mxu0 0.0
  %362 = vmatpush1.msra.mxu0 0.0
  %363 = vmatprep.subr.mxu0 0.0
  %364 = vmatpush1.msra.mxu0 0.0
  %365 = vmatprep.subr.mxu0 0.0
  %366 = vmatpush1.msra.mxu0 0.0
  %367 = vmatprep.subr.mxu0 0.0
  %368 = vmatpush1.msra.mxu0 0.0
  %369 = vmatprep.subr.mxu0 0.0
  %370 = vmatpush1.msra.mxu0 0.0
  %371 = vmatprep.subr.mxu0 0.0
  %372 = vmatpush1.msra.mxu0 0.0
  %373 = vmatprep.subr.mxu0 0.0
  %374 = vmatpush1.msra.mxu0 0.0
  %375 = vmatprep.subr.mxu0 0.0
  %376 = vmatpush1.msra.mxu0 0.0
  %377 = vmatprep.subr.mxu0 0.0
  %378 = vmatpush1.msra.mxu0 0.0
  %379 = vmatprep.subr.mxu0 0.0
  %380 = vmatpush1.msra.mxu0 0.0
  %381 = vmatprep.subr.mxu0 0.0
  %382 = vmatpush1.msra.mxu0 0.0
  %383 = vmatprep.subr.mxu0 0.0
  %384 = vmatpush1.msra.mxu0 0.0
  %385 = vmatprep.subr.mxu0 0.0
  %386 = vmatpush1.msra.mxu0 0.0
  %387 = vmatprep.subr.mxu0 0.0
  %388 = vmatpush1.msra.mxu0 0.0
  %389 = vmatprep.subr.mxu0 0.0
  %390 = vmatpush1.msra.mxu0 0.0
  %391 = vmatprep.subr.mxu0 0.0
  %392 = vmatpush1.msra.mxu0 0.0
  %393 = vmatprep.mubr.f32.mxu0 0.0
  %394 = vmatmul.mubr.f32.gmra.mrb[0].mxu0 %v324
  %v395 = vpop.f32.mrb[0].mxu0
  %v396 = vadd.f32 0.0, %v395
  %v397 = vpop.f32.mrb[0].mxu0
  %398 = vdwg.mxu0
  %v399 = vld [vmem:[%s7] sm:$0x7f]
  %v401 = vsel %vm166, %v399, 0
  %403 = vmatprep.subr.mxu0 0.0
  %404 = vmatpush1.msra.mxu0 %v401
  %405 = vmatprep.subr.mxu0 0.0
  %406 = vmatpush1.msra.mxu0 0.0
  %407 = vmatprep.subr.mxu0 0.0
  %408 = vmatpush1.msra.mxu0 0.0
  %409 = vmatprep.subr.mxu0 0.0
  %410 = vmatpush1.msra.mxu0 0.0
  %411 = vmatprep.subr.mxu0 0.0
  %412 = vmatpush1.msra.mxu0 0.0
  %413 = vmatprep.subr.mxu0 0.0
  %414 = vmatpush1.msra.mxu0 0.0
  %415 = vmatprep.subr.mxu0 0.0
  %416 = vmatpush1.msra.mxu0 0.0
  %417 = vmatprep.subr.mxu0 0.0
  %418 = vmatpush1.msra.mxu0 0.0
  %419 = vmatprep.subr.mxu0 0.0
  %420 = vmatpush1.msra.mxu0 0.0
  %421 = vmatprep.subr.mxu0 0.0
  %422 = vmatpush1.msra.mxu0 0.0
  %423 = vmatprep.subr.mxu0 0.0
  %424 = vmatpush1.msra.mxu0 0.0
  %425 = vmatprep.subr.mxu0 0.0
  %426 = vmatpush1.msra.mxu0 0.0
  %427 = vmatprep.subr.mxu0 0.0
  %428 = vmatpush1.msra.mxu0 0.0
  %429 = vmatprep.subr.mxu0 0.0
  %430 = vmatpush1.msra.mxu0 0.0
  %431 = vmatprep.subr.mxu0 0.0
  %432 = vmatpush1.msra.mxu0 0.0
  %433 = vmatprep.subr.mxu0 0.0
  %434 = vmatpush1.msra.mxu0 0.0
  %435 = vmatprep.subr.mxu0 0.0
  %436 = vmatpush1.msra.mxu0 0.0
  %437 = vmatprep.subr.mxu0 0.0
  %438 = vmatpush1.msra.mxu0 0.0
  %439 = vmatprep.subr.mxu0 0.0
  %440 = vmatpush1.msra.mxu0 0.0
  %441 = vmatprep.subr.mxu0 0.0
  %442 = vmatpush1.msra.mxu0 0.0
  %443 = vmatprep.subr.mxu0 0.0
  %444 = vmatpush1.msra.mxu0 0.0
  %445 = vmatprep.subr.mxu0 0.0
  %446 = vmatpush1.msra.mxu0 0.0
  %447 = vmatprep.subr.mxu0 0.0
  %448 = vmatpush1.msra.mxu0 0.0
  %449 = vmatprep.subr.mxu0 0.0
  %450 = vmatpush1.msra.mxu0 0.0
  %451 = vmatprep.subr.mxu0 0.0
  %452 = vmatpush1.msra.mxu0 0.0
  %453 = vmatprep.subr.mxu0 0.0
  %454 = vmatpush1.msra.mxu0 0.0
  %455 = vmatprep.subr.mxu0 0.0
  %456 = vmatpush1.msra.mxu0 0.0
  %457 = vmatprep.subr.mxu0 0.0
  %458 = vmatpush1.msra.mxu0 0.0
  %459 = vmatprep.subr.mxu0 0.0
  %460 = vmatpush1.msra.mxu0 0.0
  %461 = vmatprep.subr.mxu0 0.0
  %462 = vmatpush1.msra.mxu0 0.0
  %463 = vmatprep.subr.mxu0 0.0
  %464 = vmatpush1.msra.mxu0 0.0
  %465 = vmatprep.subr.mxu0 0.0
  %466 = vmatpush1.msra.mxu0 0.0
  %467 = vmatprep.mubr.f32.mxu0 0.0
  %468 = vmatmul.mubr.f32.gmra.mrb[0].mxu0 %v324
  %v469 = vpop.f32.mrb[0].mxu0
  %v470 = vadd.f32 0.0, %v469
  %v471 = vpop.f32.mrb[0].mxu0
  %472 = vdwg.mxu0
  %v475 = vunpack.c.l.s4 1966171168
  %v476 = vunpack.c.0.s8 %v475
  %v477 = vlaneseq
  %v478 = vshrl.u32 %v477, 7
  %v479 = vsub.s32 %v476, %v478
  %v480 = vrot.slane %v396, %v479
  %v481 = vcombine.high %v480, %v480
  %v483 = vunpack.c.l.s4 1966171168
  %v484 = vunpack.c.0.s8 %v483
  %v485 = vlaneseq
  %v486 = vshrl.u32 %v485, 7
  %v487 = vsub.s32 %v484, %v486
  %v488 = vrot.slane %v480, %v487
  %v490 = vunpack.c.l.s4 1966171168
  %v491 = vunpack.c.0.s8 %v490
  %v492 = vlaneseq
  %v493 = vshrl.u32 %v492, 7
  %v494 = vsub.s32 %v491, %v493
  %v495 = vrot.slane %v481, %v494
  %v496 = vlaneseq
  %v497 = vshrl.u32 %v496, 7
  %v498 = vsub.s32 0, %v497
  %v499 = vrot.slane %v488, %v498
  %v500 = vlaneseq
  %v501 = vshrl.u32 %v500, 7
  %v502 = vsub.s32 0, %v501
  %v503 = vrot.slane %v495, %v502
  %v506 = vmul.f32 %v29, %v499
  %v507 = vmul.f32 %v30, %v503
  %v510 = vunpack.c.l.s4 1966171168
  %v511 = vunpack.c.0.s8 %v510
  %v512 = vlaneseq
  %v513 = vshrl.u32 %v512, 7
  %v514 = vsub.s32 %v511, %v513
  %v515 = vrot.slane %v470, %v514
  %v516 = vcombine.high %v515, %v515
  %v518 = vunpack.c.l.s4 1966171168
  %v519 = vunpack.c.0.s8 %v518
  %v520 = vlaneseq
  %v521 = vshrl.u32 %v520, 7
  %v522 = vsub.s32 %v519, %v521
  %v523 = vrot.slane %v515, %v522
  %v525 = vunpack.c.l.s4 1966171168
  %v526 = vunpack.c.0.s8 %v525
  %v527 = vlaneseq
  %v528 = vshrl.u32 %v527, 7
  %v529 = vsub.s32 %v526, %v528
  %v530 = vrot.slane %v516, %v529
  %v531 = vlaneseq
  %v532 = vshrl.u32 %v531, 7
  %v533 = vsub.s32 0, %v532
  %v534 = vrot.slane %v523, %v533
  %v535 = vlaneseq
  %v536 = vshrl.u32 %v535, 7
  %v537 = vsub.s32 0, %v536
  %v538 = vrot.slane %v530, %v537
  %v541 = vadd.f32 %v506, %v534
  %v542 = vadd.f32 %v507, %v538
  %543 = vst.msk [vmem:[%s8] sm:$0xff] %vm52, %v541
  %544 = vst.msk [vmem:[%s8 + $0x8] sm:$0xff] %vm52, %v542
  // Predicated region
  $region34: #{daft_block.1} parent=0 // pred_check
    _
  $region35: #{daft_block.1} parent=0 // pred_check_branch
    %546 = sbr.rel (0) target = $region37
  $region36: #{daft_block.1} parent=0 // pred_region
    _
  $region37: #{daft_block.1} parent=0 // pred_fallthru
    _
  // Predicated region
  $region38: #{daft_block.1} parent=0 // pred_check
    _
  $region39: #{daft_block.1} parent=0 // pred_check_branch
    %548 = sbr.rel (0) target = $region41
  $region40: #{daft_block.1} parent=0 // pred_region
    _
  $region41: #{daft_block.1} parent=0 // pred_fallthru
    _

</llo_original>
